<compile_context>
chip_gen: v6e
topology: v6e:2x2x1
jax: 0.10.0
libtpu: 0.0.40
codegen_flags: <defaults>
</compile_context>

<pallas_src>
import functools

import jax
import jax.numpy as jnp
from jax import lax
from jax.experimental import pallas as pl
from jax.experimental.pallas import tpu as pltpu


def _round_up(x, m):
    return (x + m - 1) // m * m


def _clip_loss_kernel(scale_ref, img_ref, txt_ref, out_ref,
                      txt_mm_ref, txt_inv_ref, col_acc_ref,
                      row_lse_acc_ref, diag_acc_ref,
                      *, B, B_pad, TM, mm_dtype):
    f32 = jnp.float32
    eps2 = f32(1e-24)            # (F.normalize eps = 1e-12) ** 2
    scale = scale_ref[0, 0]
    pid = pl.program_id(0)
    padded = B != B_pad          # static python bool

    # ---- one-time init: normalize the resident text block, zero accumulators ----
    @pl.when(pid == 0)
    def _init():
        txt = txt_ref[...].astype(f32)
        tinv = lax.rsqrt(jnp.maximum(jnp.sum(txt * txt, axis=-1, keepdims=True), eps2))
        txt_inv_ref[...] = tinv
        txt_mm_ref[...] = (txt * tinv).astype(mm_dtype)
        col_acc_ref[...] = jnp.zeros_like(col_acc_ref)
        row_lse_acc_ref[...] = jnp.zeros_like(row_lse_acc_ref)
        diag_acc_ref[...] = jnp.zeros_like(diag_acc_ref)

    # ---- per-tile: TM rows of the (B_pad, B_pad) logits matrix ----
    img = img_ref[...].astype(f32)                                           # (TM, D)
    iinv = lax.rsqrt(jnp.maximum(jnp.sum(img * img, axis=-1, keepdims=True), eps2))
    img_n = img * (iinv * scale)          # logit_scale folded into the image side (f32)
    img_mm = img_n.astype(mm_dtype)

    # logits tile (scale already applied): (TM, B_pad), f32 accumulation on the MXU
    logits = jnp.dot(img_mm, txt_mm_ref[...].T, preferred_element_type=f32)

    # Shared shift: |logits| <= scale because both sides are L2-normalized.
    # NOTE: terms below (scale - 88) underflow in exp(); harmless for the loss
    # except in pathological cases (CLIP clamps scale <= 100).
    E = jnp.exp(logits - scale)

    row_start = pl.multiple_of(pid * TM, TM)
    if padded:
        row_valid = (row_start + lax.broadcasted_iota(jnp.int32, (TM, 1), 0)) < B
        col_valid = lax.broadcasted_iota(jnp.int32, (1, B_pad), 1) < B
        E_rows = jnp.where(col_valid, E, 0.0)     # padded text cols excluded from row lse
        E_cols = jnp.where(row_valid, E, 0.0)     # padded image rows excluded from col sums
    else:
        E_rows = E
        E_cols = E

    row_lse = jnp.log(jnp.sum(E_rows, axis=-1, keepdims=True)) + scale        # (TM, 1)

    # Diagonal logits in f32 straight from the features (no B x B masking):
    # diag[i] = scale * <img_n[i], txt_n[i]>  (scale already folded into img_n).
    txt_rows = txt_ref[pl.ds(row_start, TM), :].astype(f32)
    txt_rows = txt_rows * txt_inv_ref[pl.ds(row_start, TM), :]
    diag = jnp.sum(img_n * txt_rows, axis=-1, keepdims=True)                  # (TM, 1)

    if padded:
        row_lse = jnp.where(row_valid, row_lse, 0.0)
        diag = jnp.where(row_valid, diag, 0.0)

    row_lse_acc_ref[...] += jnp.sum(row_lse, keepdims=True)
    diag_acc_ref[...] += jnp.sum(diag, keepdims=True)
    col_acc_ref[...] += jnp.sum(E_cols, axis=0, keepdims=True)

    # ---- finalize on the last row tile ----
    @pl.when(pid == pl.num_programs(0) - 1)
    def _finalize():
        col_sum = jnp.maximum(col_acc_ref[...], f32(1e-30))
        col_lse = jnp.log(col_sum) + scale                                    # (1, B_pad)
        if padded:
            col_valid_f = lax.broadcasted_iota(jnp.int32, (1, B_pad), 1) < B
            col_lse = jnp.where(col_valid_f, col_lse, 0.0)
        sum_col_lse = jnp.sum(col_lse, keepdims=True)
        total = row_lse_acc_ref[...] + sum_col_lse - 2.0 * diag_acc_ref[...]
        out_ref[...] = total * f32(0.5 / B)


def clip_contrastive_loss(image_features, text_features, logit_scale, *,
                          tile_m=256, matmul_dtype=None):
    """Pallas implementation of ClipLoss.forward (world_size=1). Returns a scalar f32 loss."""
    # Batch size mismatch handling: truncate to the min batch (as the module does).
    b = min(image_features.shape[0], text_features.shape[0])
    image_features = image_features[:b]
    text_features = text_features[:b]
    B, D = image_features.shape
    assert text_features.shape == (B, D)

    if matmul_dtype is None:
        matmul_dtype = (jnp.bfloat16
                        if (image_features.dtype == jnp.bfloat16
                            and text_features.dtype == jnp.bfloat16)
                        else jnp.float32)
    mm_dtype = jnp.dtype(matmul_dtype)

    # Row-tile size: multiple of 8 sublanes, no bigger than the (padded) batch.
    TM = _round_up(min(int(tile_m), _round_up(B, 8)), 8)
    B_pad = _round_up(B, TM)
    num_tiles = B_pad // TM

    if B_pad != B:
        pad = ((0, B_pad - B), (0, 0))
        image_features = jnp.pad(image_features, pad)
        text_features = jnp.pad(text_features, pad)

    scale = jnp.asarray(logit_scale, jnp.float32).reshape(1, 1)

    # VMEM budget sized to the actual buffers (double-buffered inputs + scratch + temps).
    in_bytes = jnp.dtype(image_features.dtype).itemsize
    mm_bytes = mm_dtype.itemsize
    est = (2 * TM * D * in_bytes            # image tile (double buffered)
           + 2 * B_pad * D * in_bytes       # resident text block
           + B_pad * D * mm_bytes           # normalized text scratch
           + B_pad * 512 + B_pad * 32       # inv norms + column accumulator (tile-padded)
           + 6 * TM * B_pad * 4             # logits / exp temporaries
           + 4 * TM * D * 4)                # f32 image-tile temporaries
    vmem_limit = int(min(100 * 2**20, max(32 * 2**20, int(1.5 * est))))

    kernel = functools.partial(_clip_loss_kernel, B=B, B_pad=B_pad, TM=TM,
                               mm_dtype=mm_dtype)

    out = pl.pallas_call(
        kernel,
        out_shape=jax.ShapeDtypeStruct((1, 1), jnp.float32),
        grid_spec=pltpu.PrefetchScalarGridSpec(
            num_scalar_prefetch=0,
            grid=(num_tiles,),
            in_specs=[
                pl.BlockSpec(memory_space=pltpu.MemorySpace.SMEM),   # logit_scale (1,1)
                pl.BlockSpec((TM, D), lambda i: (i, 0)),             # image rows, tiled
                pl.BlockSpec((B_pad, D), lambda i: (0, 0)),          # text, resident
            ],
            out_specs=pl.BlockSpec((1, 1), lambda i: (0, 0)),
            scratch_shapes=[
                pltpu.VMEM((B_pad, D), mm_dtype),       # normalized text for the MXU
                pltpu.VMEM((B_pad, 1), jnp.float32),    # text inverse norms
                pltpu.VMEM((1, B_pad), jnp.float32),    # per-column sum(exp) accumulator
                pltpu.VMEM((1, 1), jnp.float32),        # sum of row logsumexp
                pltpu.VMEM((1, 1), jnp.float32),        # sum of diagonal logits
            ],
        ),
        compiler_params=pltpu.CompilerParams(
            dimension_semantics=("arbitrary",),        # sequential reduction over row tiles
            vmem_limit_bytes=vmem_limit,
        ),
    )(scale, image_features, text_features)
    return out[0, 0]


def _reference_loss(image_features, text_features, logit_scale):
    """Pure-JAX reference mirroring the PyTorch module (world_size=1)."""
    b = min(image_features.shape[0], text_features.shape[0])
    image_features = image_features[:b]
    text_features = text_features[:b]

    def normalize(x):
        n = jnp.linalg.norm(x.astype(jnp.float32), axis=-1, keepdims=True)
        return x.astype(jnp.float32) / jnp.maximum(n, 1e-12)

    img = normalize(image_features)
    txt = normalize(text_features)
    logits_i = logit_scale * img @ txt.T
    logits_t = logits_i.T
    labels = jnp.arange(logits_i.shape[0])

    def ce(logits, labels):
        lse = jax.scipy.special.logsumexp(logits, axis=-1)
        correct = jnp.take_along_axis(logits, labels[:, None], axis=-1)[:, 0]
        return jnp.mean(lse - correct)

    return 0.5 * (ce(logits_i, labels) + ce(logits_t, labels))


if __name__ == "__main__":
    key = jax.random.PRNGKey(0)
    k1, k2, k3, k4 = jax.random.split(key, 4)
    logit_scale = jnp.float32(1.0 / 0.07)   # CLIP-style inverse temperature

    # --- Test 1: small single-tile case, f32 matmul (exact path) ---
    B, D = 8, 32
    img = jax.random.normal(k1, (B, D), dtype=jnp.float32)
    txt = jax.random.normal(k2, (B, D), dtype=jnp.float32)
    loss = jax.block_until_ready(clip_contrastive_loss(img, txt, logit_scale))
    ref = _reference_loss(img, txt, logit_scale)
    assert jnp.allclose(loss, ref, atol=1e-4, rtol=1e-4), (loss, ref)

    # --- Test 2: same inputs, bf16 MXU matmul (f32 accumulation) ---
    loss_bf16 = jax.block_until_ready(
        clip_contrastive_loss(img, txt, logit_scale, matmul_dtype=jnp.bfloat16))
    assert jnp.allclose(loss_bf16, ref, atol=0.1, rtol=0.05), (loss_bf16, ref)

    # --- Test 3: multi-tile grid + batch padding + batch-size mismatch truncation ---
    img3 = jax.random.normal(k3, (26, 32), dtype=jnp.float32)   # truncated to 24
    txt3 = jax.random.normal(k4, (24, 32), dtype=jnp.float32)
    loss3 = jax.block_until_ready(
        clip_contrastive_loss(img3, txt3, logit_scale, tile_m=16))   # B=24 -> B_pad=32, 2 tiles
    ref3 = _reference_loss(img3, txt3, logit_scale)
    assert jnp.allclose(loss3, ref3, atol=1e-4, rtol=1e-4), (loss3, ref3)

    print("KERNEL_OK")
</pallas_src>

<mosaic_0001>
module attributes {stable_mosaic.version = 11 : i64} {
  func.func @_clip_loss_kernel(%arg0: i32, %arg1: memref<1x1xf32, #tpu.memory_space<smem>>, %arg2: memref<8x32xf32, #tpu.memory_space<vmem>>, %arg3: memref<8x32xf32, #tpu.memory_space<vmem>>, %arg4: memref<1x1xf32, #tpu.memory_space<vmem>>, %arg5: memref<8x32xf32, #tpu.memory_space<vmem>>, %arg6: memref<8x1xf32, #tpu.memory_space<vmem>>, %arg7: memref<1x8xf32, #tpu.memory_space<vmem>>, %arg8: memref<1x1xf32, #tpu.memory_space<vmem>>, %arg9: memref<1x1xf32, #tpu.memory_space<vmem>>) attributes {dimension_semantics = [#tpu.dimension_semantics<arbitrary>], iteration_bounds = array<i64: 1>, scalar_prefetch = 0 : i64, scratch_operands = 5 : i64, tpu.core_type = #tpu.core_type<tc>, window_params = [{transform_indices = @transform_0, window_bounds = array<i64: 1, 1>}, {transform_indices = @transform_1, window_bounds = array<i64: 8, 32>}, {pipeline_mode = #tpu.pipeline_mode<synchronous>, transform_indices = @transform_2, window_bounds = array<i64: 8, 32>}, {pipeline_mode = #tpu.pipeline_mode<synchronous>, transform_indices = @transform_3, window_bounds = array<i64: 1, 1>}]} {
    %c0 = arith.constant 0 : index
    %c0_0 = arith.constant 0 : index
    %0 = memref.load %arg1[%c0, %c0_0] : memref<1x1xf32, #tpu.memory_space<smem>>
    %c0_i32 = arith.constant 0 : i32
    %1 = arith.cmpi eq, %arg0, %c0_i32 : i32
    %2 = arith.extui %1 : i1 to i32
    %cst = arith.constant 1.000000e-24 : f32
    %c0_i32_1 = arith.constant 0 : i32
    %3 = arith.cmpi ne, %2, %c0_i32_1 : i32
    scf.if %3 {
      %c0_30 = arith.constant 0 : index
      %c0_31 = arith.constant 0 : index
      %61 = vector.load %arg3[%c0_30, %c0_31] : memref<8x32xf32, #tpu.memory_space<vmem>>, vector<8x32xf32>
      %62 = arith.mulf %61, %61 : vector<8x32xf32>
      %cst_32 = arith.constant dense<0.000000e+00> : vector<8xf32>
      %63 = vector.multi_reduction <add>, %62, %cst_32 [1] : vector<8x32xf32> to vector<8xf32>
      %64 = vector.shape_cast %63 : vector<8xf32> to vector<8x1xf32>
      %65 = vector.broadcast %cst : f32 to vector<8x1xf32>
      %66 = arith.maximumf %64, %65 : vector<8x1xf32>
      %67 = math.rsqrt %66 : vector<8x1xf32>
      %c0_33 = arith.constant 0 : index
      %c0_34 = arith.constant 0 : index
      %68 = vector.load %arg6[%c0_33, %c0_34] : memref<8x1xf32, #tpu.memory_space<vmem>>, vector<8x1xf32>
      tpu.vector_store %arg6[%c0_33, %c0_34], %67 {strides = array<i32>} : memref<8x1xf32, #tpu.memory_space<vmem>>, vector<8x1xf32>,
      %69 = vector.broadcast %67 : vector<8x1xf32> to vector<8x32xf32>
      %70 = arith.mulf %61, %69 : vector<8x32xf32>
      %c0_35 = arith.constant 0 : index
      %c0_36 = arith.constant 0 : index
      %71 = vector.load %arg5[%c0_35, %c0_36] : memref<8x32xf32, #tpu.memory_space<vmem>>, vector<8x32xf32>
      tpu.vector_store %arg5[%c0_35, %c0_36], %70 {strides = array<i32>} : memref<8x32xf32, #tpu.memory_space<vmem>>, vector<8x32xf32>,
      %cst_37 = arith.constant 0.000000e+00 : f32
      %72 = vector.broadcast %cst_37 : f32 to vector<1x8xf32>
      %c0_38 = arith.constant 0 : index
      %c0_39 = arith.constant 0 : index
      %73 = vector.load %arg7[%c0_38, %c0_39] : memref<1x8xf32, #tpu.memory_space<vmem>>, vector<1x8xf32>
      tpu.vector_store %arg7[%c0_38, %c0_39], %72 {strides = array<i32>} : memref<1x8xf32, #tpu.memory_space<vmem>>, vector<1x8xf32>,
      %cst_40 = arith.constant 0.000000e+00 : f32
      %74 = vector.broadcast %cst_40 : f32 to vector<1x1xf32>
      %c0_41 = arith.constant 0 : index
      %c0_42 = arith.constant 0 : index
      %75 = vector.load %arg8[%c0_41, %c0_42] : memref<1x1xf32, #tpu.memory_space<vmem>>, vector<1x1xf32>
      tpu.vector_store %arg8[%c0_41, %c0_42], %74 {strides = array<i32>} : memref<1x1xf32, #tpu.memory_space<vmem>>, vector<1x1xf32>,
      %cst_43 = arith.constant 0.000000e+00 : f32
      %76 = vector.broadcast %cst_43 : f32 to vector<1x1xf32>
      %c0_44 = arith.constant 0 : index
      %c0_45 = arith.constant 0 : index
      %77 = vector.load %arg9[%c0_44, %c0_45] : memref<1x1xf32, #tpu.memory_space<vmem>>, vector<1x1xf32>
      tpu.vector_store %arg9[%c0_44, %c0_45], %76 {strides = array<i32>} : memref<1x1xf32, #tpu.memory_space<vmem>>, vector<1x1xf32>,
    } else {
    }
    %c0_2 = arith.constant 0 : index
    %c0_3 = arith.constant 0 : index
    %4 = vector.load %arg2[%c0_2, %c0_3] : memref<8x32xf32, #tpu.memory_space<vmem>>, vector<8x32xf32>
    %5 = arith.mulf %4, %4 : vector<8x32xf32>
    %cst_4 = arith.constant dense<0.000000e+00> : vector<8xf32>
    %6 = vector.multi_reduction <add>, %5, %cst_4 [1] : vector<8x32xf32> to vector<8xf32>
    %7 = vector.shape_cast %6 : vector<8xf32> to vector<8x1xf32>
    %cst_5 = arith.constant 1.000000e-24 : f32
    %8 = vector.broadcast %cst_5 : f32 to vector<8x1xf32>
    %9 = arith.maximumf %7, %8 : vector<8x1xf32>
    %10 = math.rsqrt %9 : vector<8x1xf32>
    %11 = vector.broadcast %0 : f32 to vector<8x1xf32>
    %12 = arith.mulf %10, %11 : vector<8x1xf32>
    %13 = vector.broadcast %12 : vector<8x1xf32> to vector<8x32xf32>
    %14 = arith.mulf %4, %13 : vector<8x32xf32>
    %c0_6 = arith.constant 0 : index
    %c0_7 = arith.constant 0 : index
    %15 = vector.load %arg5[%c0_6, %c0_7] : memref<8x32xf32, #tpu.memory_space<vmem>>, vector<8x32xf32>
    %16 = tpu.transpose %15, [1, 0] : vector<8x32xf32> -> vector<32x8xf32>
    %cst_8 = arith.constant dense<0.000000e+00> : vector<8x8xf32>
    %17 = tpu.matmul %14, %16, %cst_8 {dimension_numbers = #tpu.dot_dimension_numbers<[1], [0], [0], [1], [0, 0, 1, 1], [], []>} : vector<8x32xf32>, vector<32x8xf32>, vector<8x8xf32> -> vector<8x8xf32>
    %18 = vector.broadcast %0 : f32 to vector<8x8xf32>
    %19 = arith.subf %17, %18 : vector<8x8xf32>
    %20 = math.exp %19 : vector<8x8xf32>
    %c8_i32 = arith.constant 8 : i32
    %21 = arith.muli %arg0, %c8_i32 : i32
    %22 = tpu.assume_multiple %21, 8 : i32
    %cst_9 = arith.constant dense<0.000000e+00> : vector<8xf32>
    %23 = vector.multi_reduction <add>, %20, %cst_9 [1] : vector<8x8xf32> to vector<8xf32>
    %24 = vector.shape_cast %23 : vector<8xf32> to vector<8x1xf32>
    %25 = math.log %24 : vector<8x1xf32>
    %26 = vector.broadcast %0 : f32 to vector<8x1xf32>
    %27 = arith.addf %25, %26 : vector<8x1xf32>
    %28 = arith.index_cast %22 : i32 to index
    %c0_10 = arith.constant 0 : index
    %29 = vector.load %arg3[%28, %c0_10] : memref<8x32xf32, #tpu.memory_space<vmem>>, vector<8x32xf32>
    %30 = arith.index_cast %22 : i32 to index
    %c0_11 = arith.constant 0 : index
    %31 = vector.load %arg6[%30, %c0_11] : memref<8x1xf32, #tpu.memory_space<vmem>>, vector<8x1xf32>
    %32 = vector.broadcast %31 : vector<8x1xf32> to vector<8x32xf32>
    %33 = arith.mulf %29, %32 : vector<8x32xf32>
    %34 = arith.mulf %14, %33 : vector<8x32xf32>
    %cst_12 = arith.constant dense<0.000000e+00> : vector<8xf32>
    %35 = vector.multi_reduction <add>, %34, %cst_12 [1] : vector<8x32xf32> to vector<8xf32>
    %36 = vector.shape_cast %35 : vector<8xf32> to vector<8x1xf32>
    %c0_13 = arith.constant 0 : index
    %c0_14 = arith.constant 0 : index
    %37 = vector.load %arg8[%c0_13, %c0_14] : memref<1x1xf32, #tpu.memory_space<vmem>>, vector<1x1xf32>
    %38 = vector.shape_cast %27 : vector<8x1xf32> to vector<1x8x1xf32>
    %cst_15 = arith.constant dense<0.000000e+00> : vector<1xf32>
    %39 = vector.multi_reduction <add>, %38, %cst_15 [1, 2] : vector<1x8x1xf32> to vector<1xf32>
    %40 = vector.shape_cast %39 : vector<1xf32> to vector<1x1x1xf32>
    %41 = vector.extract %40[0, 0, 0] : f32 from vector<1x1x1xf32>
    %42 = vector.broadcast %41 : f32 to vector<1x1xf32>
    %43 = arith.addf %37, %42 : vector<1x1xf32>
    %c0_16 = arith.constant 0 : index
    %c0_17 = arith.constant 0 : index
    %44 = vector.load %arg8[%c0_16, %c0_17] : memref<1x1xf32, #tpu.memory_space<vmem>>, vector<1x1xf32>
    tpu.vector_store %arg8[%c0_16, %c0_17], %43 {strides = array<i32>} : memref<1x1xf32, #tpu.memory_space<vmem>>, vector<1x1xf32>,
    %c0_18 = arith.constant 0 : index
    %c0_19 = arith.constant 0 : index
    %45 = vector.load %arg9[%c0_18, %c0_19] : memref<1x1xf32, #tpu.memory_space<vmem>>, vector<1x1xf32>
    %46 = vector.shape_cast %36 : vector<8x1xf32> to vector<1x8x1xf32>
    %cst_20 = arith.constant dense<0.000000e+00> : vector<1xf32>
    %47 = vector.multi_reduction <add>, %46, %cst_20 [1, 2] : vector<1x8x1xf32> to vector<1xf32>
    %48 = vector.shape_cast %47 : vector<1xf32> to vector<1x1x1xf32>
    %49 = vector.extract %48[0, 0, 0] : f32 from vector<1x1x1xf32>
    %50 = vector.broadcast %49 : f32 to vector<1x1xf32>
    %51 = arith.addf %45, %50 : vector<1x1xf32>
    %c0_21 = arith.constant 0 : index
    %c0_22 = arith.constant 0 : index
    %52 = vector.load %arg9[%c0_21, %c0_22] : memref<1x1xf32, #tpu.memory_space<vmem>>, vector<1x1xf32>
    tpu.vector_store %arg9[%c0_21, %c0_22], %51 {strides = array<i32>} : memref<1x1xf32, #tpu.memory_space<vmem>>, vector<1x1xf32>,
    %c0_23 = arith.constant 0 : index
    %c0_24 = arith.constant 0 : index
    %53 = vector.load %arg7[%c0_23, %c0_24] : memref<1x8xf32, #tpu.memory_space<vmem>>, vector<1x8xf32>
    %cst_25 = arith.constant dense<0.000000e+00> : vector<8xf32>
    %54 = vector.multi_reduction <add>, %20, %cst_25 [0] : vector<8x8xf32> to vector<8xf32>
    %55 = vector.shape_cast %54 : vector<8xf32> to vector<1x8xf32>
    %56 = arith.addf %53, %55 : vector<1x8xf32>
    %c0_26 = arith.constant 0 : index
    %c0_27 = arith.constant 0 : index
    %57 = vector.load %arg7[%c0_26, %c0_27] : memref<1x8xf32, #tpu.memory_space<vmem>>, vector<1x8xf32>
    tpu.vector_store %arg7[%c0_26, %c0_27], %56 {strides = array<i32>} : memref<1x8xf32, #tpu.memory_space<vmem>>, vector<1x8xf32>,
    %c0_i32_28 = arith.constant 0 : i32
    %58 = arith.cmpi eq, %arg0, %c0_i32_28 : i32
    %59 = arith.extui %58 : i1 to i32
    %c0_i32_29 = arith.constant 0 : i32
    %60 = arith.cmpi ne, %59, %c0_i32_29 : i32
    scf.if %60 {
      %c0_30 = arith.constant 0 : index
      %c0_31 = arith.constant 0 : index
      %61 = vector.load %arg7[%c0_30, %c0_31] : memref<1x8xf32, #tpu.memory_space<vmem>>, vector<1x8xf32>
      %cst_32 = arith.constant 1.000000e-30 : f32
      %62 = vector.broadcast %cst_32 : f32 to vector<1x8xf32>
      %63 = arith.maximumf %61, %62 : vector<1x8xf32>
      %64 = math.log %63 : vector<1x8xf32>
      %65 = vector.broadcast %0 : f32 to vector<1x8xf32>
      %66 = arith.addf %64, %65 : vector<1x8xf32>
      %67 = vector.shape_cast %66 : vector<1x8xf32> to vector<1x1x8xf32>
      %cst_33 = arith.constant dense<0.000000e+00> : vector<1xf32>
      %68 = vector.multi_reduction <add>, %67, %cst_33 [1, 2] : vector<1x1x8xf32> to vector<1xf32>
      %69 = vector.shape_cast %68 : vector<1xf32> to vector<1x1x1xf32>
      %70 = vector.extract %69[0, 0, 0] : f32 from vector<1x1x1xf32>
      %71 = vector.broadcast %70 : f32 to vector<1x1xf32>
      %c0_34 = arith.constant 0 : index
      %c0_35 = arith.constant 0 : index
      %72 = vector.load %arg8[%c0_34, %c0_35] : memref<1x1xf32, #tpu.memory_space<vmem>>, vector<1x1xf32>
      %73 = arith.addf %72, %71 : vector<1x1xf32>
      %c0_36 = arith.constant 0 : index
      %c0_37 = arith.constant 0 : index
      %74 = vector.load %arg9[%c0_36, %c0_37] : memref<1x1xf32, #tpu.memory_space<vmem>>, vector<1x1xf32>
      %cst_38 = arith.constant 2.000000e+00 : f32
      %75 = vector.broadcast %cst_38 : f32 to vector<1x1xf32>
      %76 = arith.mulf %75, %74 : vector<1x1xf32>
      %77 = arith.subf %73, %76 : vector<1x1xf32>
      %cst_39 = arith.constant 6.250000e-02 : f32
      %78 = vector.broadcast %cst_39 : f32 to vector<1x1xf32>
      %79 = arith.mulf %77, %78 : vector<1x1xf32>
      %c0_40 = arith.constant 0 : index
      %c0_41 = arith.constant 0 : index
      %80 = vector.load %arg4[%c0_40, %c0_41] : memref<1x1xf32, #tpu.memory_space<vmem>>, vector<1x1xf32>
      tpu.vector_store %arg4[%c0_40, %c0_41], %79 {strides = array<i32>} : memref<1x1xf32, #tpu.memory_space<vmem>>, vector<1x1xf32>,
    } else {
    }
    return
  }
  func.func @transform_0(%arg0: i32) -> (i32, i32) {
    %c0_i32 = arith.constant 0 : i32
    %c0_i32_0 = arith.constant 0 : i32
    %c0_i32_1 = arith.constant 0 : i32
    return %c0_i32, %c0_i32_0 : i32, i32
  }
  func.func @transform_1(%arg0: i32) -> (i32, i32) {
    %c0_i32 = arith.constant 0 : i32
    %c0_i32_0 = arith.constant 0 : i32
    return %arg0, %c0_i32 : i32, i32
  }
  func.func @transform_2(%arg0: i32) -> (i32, i32) {
    %c0_i32 = arith.constant 0 : i32
    %c0_i32_0 = arith.constant 0 : i32
    %c0_i32_1 = arith.constant 0 : i32
    return %c0_i32, %c0_i32_0 : i32, i32
  }
  func.func @transform_3(%arg0: i32) -> (i32, i32) {
    %c0_i32 = arith.constant 0 : i32
    %c0_i32_0 = arith.constant 0 : i32
    %c0_i32_1 = arith.constant 0 : i32
    return %c0_i32, %c0_i32_0 : i32, i32
  }
}

</mosaic_0001>

<llo_original>
// kernel: tpu_custom_call.1
$region0: #{tpu_custom_call.1}
  #allocation0 [shape = 'u32[]', space=smem, size = 0x4, offset = 0x4, fixed_abs, tag = 'smem constant byte address 0x4 - core index']
  #allocation1 [shape = 'u32[144,128]{1,0:T(1,128)}', space=vmem, size = 0x12000, scoped, tag = 'internal scratch']
  #allocation2 [shape = 'f32[8,32]{1,0:T(8,128)}', space=vmem, size = 0x1000, scoped, tag = 'scratch operand']
  #allocation3 [shape = 'f32[8,1]{1,0:T(8,128)}', space=vmem, size = 0x1000, scoped, tag = 'scratch operand']
  #allocation4 [shape = 'f32[1,8]{1,0:T(1,128)}', space=vmem, size = 0x200, scoped, tag = 'scratch operand']
  #allocation5 [shape = 'f32[1,1]{1,0:T(1,128)}', space=vmem, size = 0x200, scoped, tag = 'scratch operand']
  #allocation6 [shape = 'f32[1,1]{1,0:T(1,128)}', space=vmem, size = 0x200, scoped, tag = 'scratch operand']
  #allocation7 [shape = 'f32[1,1]{1,0:T(1,128)S(6)}', space=smem, size = 0x200, scoped, tag = 'scoped memory for tpu_custom_call.1']
  %s0 = inlined_call_operand.<no memory space> [shape: f32[1,1], index: 0, kind: input, shape index: {}]
  %s1 = inlined_call_operand.hbm [shape: f32[8,32], index: 1, kind: input, shape index: {}]
  %s2 = inlined_call_operand.hbm [shape: f32[8,32], index: 2, kind: input, shape index: {}]
  %s3 = inlined_call_operand.hbm [shape: f32[1,1], index: 3, kind: output, shape index: {}]
  %s4 = sld [smem:[#allocation0]]
  $region38: #{tpu_custom_call.1} parent=0
    _
  %s6 = ssub.s32 1, %s4
  %s7 = scalar_select 0, %s6, %s4
  %8 = sst [smem:[#allocation7]] %s0
  $region1: #{tpu_custom_call.1} parent=0
    #allocation8 [shape = 'u8[4096]{0}', space=vmem, size = 0x1000, scoped, tag = 'input window, operand 1, single buffered']
    #allocation9 [shape = 's32[1]{0}', space=sflag, size = 0x4, scoped, tag = 'scoped memory for tpu_custom_call.1']
    #allocation10 [shape = 's32[1]{0}', space=sflag, size = 0x4, scoped, tag = 'scoped memory for tpu_custom_call.1']
    #allocation11 [shape = 'u8[4096]{0}', space=vmem, size = 0x1000, scoped, tag = 'input window, operand 2, single buffered']
    #allocation12 [shape = 's32[1]{0}', space=sflag, size = 0x4, scoped, tag = 'scoped memory for tpu_custom_call.1']
    #allocation13 [shape = 'u8[512]{0}', space=vmem, size = 0x400, scoped, tag = 'output window, operand 0, single buffered']
    %9 = vsyncpa [#allocation9], 0
    %10 = vsyncpa [#allocation12], 0
    %11 = vsyncpa [#allocation10], 0
    // Predicated region
    $region2: #{tpu_custom_call.1} parent=1 // pred_check
      _
    $region3: #{tpu_custom_call.1} parent=1 // pred_check_branch
      %13 = sbr.rel (0) target = $region5
    $region4: #{tpu_custom_call.1} parent=1 // pred_region
      _
    $region5: #{tpu_custom_call.1} parent=1 // pred_fallthru
      _
    // Predicated region
    $region6: #{tpu_custom_call.1} parent=1 // pred_check
      _
    $region7: #{tpu_custom_call.1} parent=1 // pred_check_branch
      %15 = sbr.rel (0) target = $region9
    $region8: #{tpu_custom_call.1} parent=1 // pred_region
      %s17 = ssub.s32 128, 128
      %18 = vsyncadd [#allocation9], %s17
      %s20 = sshll.u32 [#allocation8], 4
      %s21 = int_to_ptr.vmem [resolvable:$true] %s20
      %23 = dma.hbm_to_vmem [thread:$0]  %s1, 128, %s21, [#allocation9]
    $region9: #{tpu_custom_call.1} parent=1 // pred_fallthru
      _
    // Predicated region
    $region10: #{tpu_custom_call.1} parent=1 // pred_check
      _
    $region11: #{tpu_custom_call.1} parent=1 // pred_check_branch
      %25 = sbr.rel (0) target = $region13
    $region12: #{tpu_custom_call.1} parent=1 // pred_region
      %s27 = ssub.s32 128, 128
      %28 = vsyncadd [#allocation12], %s27
      %s30 = sshll.u32 [#allocation11], 4
      %s31 = int_to_ptr.vmem [resolvable:$true] %s30
      %33 = dma.hbm_to_vmem [thread:$0]  %s2, 128, %s31, [#allocation12]
    $region13: #{tpu_custom_call.1} parent=1 // pred_fallthru
      _
    // Predicated region
    $region14: #{tpu_custom_call.1} parent=1 // pred_check
      _
    $region15: #{tpu_custom_call.1} parent=1 // pred_check_branch
      %35 = sbr.rel (0) target = $region17
    $region16: #{tpu_custom_call.1} parent=1 // pred_region
      %36 = dma.done [#allocation9], 128
    $region17: #{tpu_custom_call.1} parent=1 // pred_fallthru
      _
    // Predicated region
    $region18: #{tpu_custom_call.1} parent=1 // pred_check
      _
    $region19: #{tpu_custom_call.1} parent=1 // pred_check_branch
      %38 = sbr.rel (0) target = $region21
    $region20: #{tpu_custom_call.1} parent=1 // pred_region
      %39 = dma.done [#allocation12], 128
    $region21: #{tpu_custom_call.1} parent=1 // pred_fallthru
      _
    %s40 = sld [smem:[#allocation7]]
    %p41 = scmp.eq.s32.totalorder 0, 0
    // Predicated region
    $region22: #{tpu_custom_call.1} parent=1 // pred_check
      %p42 = pneg %p41
    $region23: #{tpu_custom_call.1} parent=1 // pred_check_branch
      %44 = sbr.rel (%p42) target = $region25
    $region24: #{tpu_custom_call.1} parent=1 // pred_region
      %v45 = vld [vmem:[#allocation11] sm:$0xff]
      %v46 = vmul.f32 %v45, %v45
      %vm47 = vcmask 261120
      %v48 = vsel %vm47, %v46, 0.0
      %49 = vadd.xlane.f32.xlu0 %v48
      %v50 = vpop.xlane.xlu0 %49
      %v51 = vmax.f32 %v50, 1e-24
      %v52 = vrsqrt.pop %v51
      %vm53 = vcmask 7168
      %54 = vst.msk [vmem:[#allocation3] sm:$0xff] %vm53, %v52
      %v55 = vmul.f32 %v45, %v52
      %56 = vst.msk [vmem:[#allocation2] sm:$0xff] %vm47, %v55
      %vm57 = vcmask 57344
      %58 = vst.msk [vmem:[#allocation4] sm:$0x1] %vm57, 0.0
      %vm59 = vcmask 0
      %60 = vst.msk [vmem:[#allocation5] sm:$0x1] %vm59, 0.0
      %61 = vst.msk [vmem:[#allocation6] sm:$0x1] %vm59, 0.0
    $region25: #{tpu_custom_call.1} parent=1 // pred_fallthru
      _
    %v62 = vld [vmem:[#allocation8] sm:$0xff]
    %v63 = vmul.f32 %v62, %v62
    %vm64 = vcmask 261120
    %v65 = vsel %vm64, %v63, 0.0
    %66 = vadd.xlane.f32.xlu0 %v65
    %v67 = vpop.xlane.xlu0 %66
    %v68 = vmax.f32 %v67, 1e-24
    %v69 = vrsqrt.pop %v68
    %v70 = vstv %s40
    %v71 = vmul.f32 %v69, %v70
    %v72 = vmul.f32 %v62, %v71
    %v73 = vld [vmem:[#allocation2] sm:$0xff]
    %v75 = vsel %vm64, %v72, 0
    %v78 = vsel %vm64, %v73, 0
    %80 = vmatprep.subr.mxu0 0.0
    %81 = vmatpush1.xpose.msra.mxu0 0.0
    %82 = vmatprep.subr.mxu0 0.0
    %83 = vmatpush1.xpose.msra.mxu0 0.0
    %84 = vmatprep.subr.mxu0 0.0
    %85 = vmatpush1.xpose.msra.mxu0 0.0
    %86 = vmatprep.subr.mxu0 0.0
    %87 = vmatpush1.xpose.msra.mxu0 0.0
    %88 = vmatprep.subr.mxu0 0.0
    %89 = vmatpush1.xpose.msra.mxu0 0.0
    %90 = vmatprep.subr.mxu0 0.0
    %91 = vmatpush1.xpose.msra.mxu0 0.0
    %92 = vmatprep.subr.mxu0 0.0
    %93 = vmatpush1.xpose.msra.mxu0 0.0
    %94 = vmatprep.subr.mxu0 0.0
    %95 = vmatpush1.xpose.msra.mxu0 0.0
    %96 = vmatprep.subr.mxu0 0.0
    %97 = vmatpush1.xpose.msra.mxu0 0.0
    %98 = vmatprep.subr.mxu0 0.0
    %99 = vmatpush1.xpose.msra.mxu0 0.0
    %100 = vmatprep.subr.mxu0 0.0
    %101 = vmatpush1.xpose.msra.mxu0 0.0
    %102 = vmatprep.subr.mxu0 0.0
    %103 = vmatpush1.xpose.msra.mxu0 0.0
    %104 = vmatprep.subr.mxu0 0.0
    %105 = vmatpush1.xpose.msra.mxu0 0.0
    %106 = vmatprep.subr.mxu0 0.0
    %107 = vmatpush1.xpose.msra.mxu0 0.0
    %108 = vmatprep.subr.mxu0 0.0
    %109 = vmatpush1.xpose.msra.mxu0 0.0
    %110 = vmatprep.subr.mxu0 0.0
    %111 = vmatpush1.xpose.msra.mxu0 %v78
    %112 = vmatprep.subr.mxu0 0.0
    %113 = vmatpush2.xpose.msra.mxu0 0.0
    %114 = vmatprep.subr.mxu0 0.0
    %115 = vmatpush2.xpose.msra.mxu0 0.0
    %116 = vmatprep.subr.mxu0 0.0
    %117 = vmatpush2.xpose.msra.mxu0 0.0
    %118 = vmatprep.subr.mxu0 0.0
    %119 = vmatpush2.xpose.msra.mxu0 0.0
    %120 = vmatprep.subr.mxu0 0.0
    %121 = vmatpush2.xpose.msra.mxu0 0.0
    %122 = vmatprep.subr.mxu0 0.0
    %123 = vmatpush2.xpose.msra.mxu0 0.0
    %124 = vmatprep.subr.mxu0 0.0
    %125 = vmatpush2.xpose.msra.mxu0 0.0
    %126 = vmatprep.subr.mxu0 0.0
    %127 = vmatpush2.xpose.msra.mxu0 0.0
    %128 = vmatprep.subr.mxu0 0.0
    %129 = vmatpush2.xpose.msra.mxu0 0.0
    %130 = vmatprep.subr.mxu0 0.0
    %131 = vmatpush2.xpose.msra.mxu0 0.0
    %132 = vmatprep.subr.mxu0 0.0
    %133 = vmatpush2.xpose.msra.mxu0 0.0
    %134 = vmatprep.subr.mxu0 0.0
    %135 = vmatpush2.xpose.msra.mxu0 0.0
    %136 = vmatprep.subr.mxu0 0.0
    %137 = vmatpush2.xpose.msra.mxu0 0.0
    %138 = vmatprep.subr.mxu0 0.0
    %139 = vmatpush2.xpose.msra.mxu0 0.0
    %140 = vmatprep.subr.mxu0 0.0
    %141 = vmatpush2.xpose.msra.mxu0 0.0
    %142 = vmatprep.subr.mxu0 0.0
    %143 = vmatpush2.xpose.msra.mxu0 0.0
    %144 = vmatprep.mubr.f32.mxu0 0.0
    %145 = vmatmul.mubr.f32.gmra.mxu0 %v75
    %v146 = vpop.f32.mrf.mxu0
    %v147 = vadd.f32 0.0, %v146
    %v148 = vpop.f32.mrf.mxu0
    %149 = vdwg.mxu0
    %v150 = vsub.f32 %v147, %v70
    %v151 = vmul.f32 %v150, 1.442695
    %v152 = vpow.pop %v151
    %s153 = smul.u32 0, 8
    %vm154 = vcmask 64512
    %v155 = vsel %vm154, %v152, 0.0
    %156 = vadd.xlane.f32.xlu0 %v155
    %v157 = vpop.xlane.xlu0 %156
    %v158 = vlog2.pop %v157
    %v159 = vmul.f32 %v158, 0.6931472
    %v160 = vadd.f32 %v159, %v70
    %s161 = scalar_lea.vmem [#allocation11], %s153
    %v162 = vld [vmem:[%s161] sm:$0xff]
    %s163 = scalar_lea.vmem [#allocation3], %s153
    %v164 = vld [vmem:[%s163] sm:$0xff]
    %166 = vset.pattern.permute.xlu0 0
    %167 = vperm.xlu0 %166, %v164
    %v168 = vpop.permute.xlu0 %167
    %v170 = vmul.f32 %v162, %v168
    %v171 = vmul.f32 %v72, %v170
    %v172 = vsel %vm64, %v171, 0.0
    %173 = vadd.xlane.f32.xlu0 %v172
    %v174 = vpop.xlane.xlu0 %173
    %v175 = vld [vmem:[#allocation5] sm:$0x1]
    %vm176 = vcmask 7168
    %v177 = vsel %vm176, %v160, 0.0
    %178 = vadd.xlane.f32.xlu0 %v177
    %v179 = vpop.xlane.xlu0 %178
    %v180 = vrot.slane %v179, 4
    %v181 = vadd.f32 %v179, %v180
    %v182 = vrot.slane %v181, 2
    %v183 = vadd.f32 %v181, %v182
    %v184 = vrot.slane %v183, 1
    %v185 = vadd.f32 %v183, %v184
    %s186 = vtos %v185
    %v187 = vstv %s186
    %v188 = vadd.f32 %v175, %v187
    %vm189 = vcmask 0
    %190 = vst.msk [vmem:[#allocation5] sm:$0x1] %vm189, %v188
    %v191 = vld [vmem:[#allocation6] sm:$0x1]
    %v192 = vsel %vm176, %v174, 0.0
    %193 = vadd.xlane.f32.xlu0 %v192
    %v194 = vpop.xlane.xlu0 %193
    %v195 = vrot.slane %v194, 4
    %v196 = vadd.f32 %v194, %v195
    %v197 = vrot.slane %v196, 2
    %v198 = vadd.f32 %v196, %v197
    %v199 = vrot.slane %v198, 1
    %v200 = vadd.f32 %v198, %v199
    %s201 = vtos %v200
    %v202 = vstv %s201
    %v203 = vadd.f32 %v191, %v202
    %204 = vst.msk [vmem:[#allocation6] sm:$0x1] %vm189, %v203
    %v205 = vld [vmem:[#allocation4] sm:$0x1]
    %v206 = vrot.slane %v155, 4
    %v207 = vadd.f32 %v155, %v206
    %v208 = vrot.slane %v207, 2
    %v209 = vadd.f32 %v207, %v208
    %v210 = vrot.slane %v209, 1
    %v211 = vadd.f32 %v209, %v210
    %v212 = vadd.f32 %v205, %v211
    %vm213 = vcmask 57344
    %214 = vst.msk [vmem:[#allocation4] sm:$0x1] %vm213, %v212
    // Predicated region
    $region26: #{tpu_custom_call.1} parent=1 // pred_check
      %p215 = pneg %p41
    $region27: #{tpu_custom_call.1} parent=1 // pred_check_branch
      %217 = sbr.rel (%p215) target = $region29
    $region28: #{tpu_custom_call.1} parent=1 // pred_region
      %v218 = vld [vmem:[#allocation4] sm:$0x1]
      %v219 = vmax.f32 %v218, 1e-30
      %v220 = vlog2.pop %v219
      %v221 = vmul.f32 %v220, 0.6931472
      %v222 = vadd.f32 %v221, %v70
      %v223 = vsel %vm213, %v222, 0.0
      %224 = vadd.xlane.f32.xlu0 %v223
      %v225 = vpop.xlane.xlu0 %224
      %v226 = vrot.slane %v225, 4
      %v227 = vadd.f32 %v225, %v226
      %v228 = vrot.slane %v227, 2
      %v229 = vadd.f32 %v227, %v228
      %v230 = vrot.slane %v229, 1
      %v231 = vadd.f32 %v229, %v230
      %s232 = vtos %v231
      %v233 = vstv %s232
      %v234 = vld [vmem:[#allocation5] sm:$0x1]
      %v235 = vadd.f32 %v234, %v233
      %v236 = vld [vmem:[#allocation6] sm:$0x1]
      %v237 = vmul.f32 %v236, 2.0
      %v238 = vsub.f32 %v235, %v237
      %v239 = vmul.f32 %v238, 0.0625
      %240 = vst.msk [vmem:[#allocation13] sm:$0x1] %vm189, %v239
    $region29: #{tpu_custom_call.1} parent=1 // pred_fallthru
      _
    // Predicated region
    $region30: #{tpu_custom_call.1} parent=1 // pred_check
      _
    $region31: #{tpu_custom_call.1} parent=1 // pred_check_branch
      %242 = sbr.rel (0) target = $region33
    $region32: #{tpu_custom_call.1} parent=1 // pred_region
      %s244 = ssub.s32 16, 16
      %245 = vsyncadd [#allocation10], %s244
      %s247 = sshll.u32 [#allocation13], 4
      %s248 = int_to_ptr.vmem [resolvable:$true] %s247
      %250 = dma.vmem_to_hbm [thread:$0]  %s248, 16, %s3, [#allocation10]
    $region33: #{tpu_custom_call.1} parent=1 // pred_fallthru
      _
    // Predicated region
    $region34: #{tpu_custom_call.1} parent=1 // pred_check
      _
    $region35: #{tpu_custom_call.1} parent=1 // pred_check_branch
      %252 = sbr.rel (0) target = $region37
    $region36: #{tpu_custom_call.1} parent=1 // pred_region
      %253 = dma.done [#allocation10], 16
    $region37: #{tpu_custom_call.1} parent=1 // pred_fallthru
      _
    %254 = vsyncpa [#allocation9], 1
    %255 = vsyncpa [#allocation12], 1
    %256 = vsyncpa [#allocation10], 1

</llo_original>
